<compile_context>
chip_gen: v6e
topology: v6e:2x2x1
jax: 0.10.0
libtpu: 0.0.40
codegen_flags: <defaults>
</compile_context>

<pallas_src>
import jax
import jax.numpy as jnp
from jax.experimental import pallas as pl
from jax.experimental.pallas import tpu as pltpu


def _round_up(n: int, m: int) -> int:
    return ((n + m - 1) // m) * m


def stonet_kernel(xt_ref, w2_ref, b2_ref, w3_ref, b3_ref, ot_ref):
    # Batch on the lane axis of every tile.  Elementwise math in f32; MXU
    # operands in the storage dtype (f32 or bf16) with f32 accumulation.
    w2 = w2_ref[...]                                       # (30, 50)
    w3 = w3_ref[...]                                       # (10, 30)

    xt = jnp.tanh(xt_ref[...].astype(jnp.float32))         # (50, tb) f32
    h = jnp.dot(w2, xt.astype(w2.dtype),
                preferred_element_type=jnp.float32)        # (30, tb) f32
    h = jnp.tanh(h + b2_ref[...])                          # bias (30, 1) broadcasts over lanes
    y = jnp.dot(w3, h.astype(w3.dtype),
                preferred_element_type=jnp.float32)        # (10, tb) f32
    y = jnp.tanh(y + b3_ref[...])                          # bias (10, 1)
    ot_ref[...] = y.astype(ot_ref.dtype)                   # lane-dense store


def stonet_forward(x, w2, b2, w3, b3, *, block_b=16384, compute_dtype=jnp.bfloat16):
    """stonet forward pass.

    x:  (B, 50) input.
    w2: (30, 50), b2: (30,)   -- fc2, PyTorch (out_features, in_features) layout.
    w3: (10, 30), b3: (10,)   -- fc3.
    compute_dtype: storage dtype for x / weights / output (default bf16; use
        jnp.float32 for a bit-accurate f32 path).  Elementwise math and MXU
        accumulation are always f32.
    Returns (B, 10) in the storage dtype.
    """
    B, D = x.shape
    n_h, d2 = w2.shape
    n_o, h2 = w3.shape
    assert d2 == D and h2 == n_h

    storage = jnp.dtype(compute_dtype) if compute_dtype is not None else jnp.dtype(jnp.float32)
    s_it = storage.itemsize

    # Wrapper-side layout plumbing: batch -> lanes, cast fused with transpose.
    xt = jnp.asarray(x.T, dtype=storage)                   # (D, B)
    w2s = w2.astype(storage)
    w3s = w3.astype(storage)
    b2c = b2.reshape(n_h, 1).astype(jnp.float32)
    b3c = b3.reshape(n_o, 1).astype(jnp.float32)

    # Batch tile on the lane axis: multiple of 128 for unmasked stores, large
    # enough to amortize the ~0.35 us per-grid-step overhead, capped at
    # ceil(B/2) so the grid has >= 2 steps for megacore (v7x).
    if B <= 128:
        tb = B
    else:
        tb = max(128, min(block_b, _round_up(pl.cdiv(B, 2), 128)))
    grid = (pl.cdiv(B, tb),)

    # Explicit VMEM budget from padded tile sizes (double-buffered I/O tiles,
    # resident weights/biases, f32 in-body temporaries), with margin.
    sub = lambda n: _round_up(n, 8)
    lane = lambda n: _round_up(n, 128)
    vmem_est = (
        2 * sub(D) * tb * s_it                                      # x^T tiles
        + 2 * sub(n_o) * tb * s_it                                  # out tiles
        + 2 * (sub(n_h) * lane(D) + sub(n_o) * lane(n_h)) * s_it    # weights
        + 2 * (sub(n_h) + sub(n_o)) * lane(1) * 4                   # biases (f32)
        + (sub(D) + sub(n_h) + sub(n_o)) * tb * 4                   # f32 temporaries
    )
    vmem_limit = min(48 * 1024 * 1024,
                     max(16 * 1024 * 1024, int(1.5 * vmem_est) + (4 << 20)))

    cost = pl.CostEstimate(
        flops=2 * B * (D * n_h + n_h * n_o),
        transcendentals=B * (D + n_h + n_o),
        bytes_accessed=(B * D * s_it                     # read x^T
                        + B * n_o * s_it                 # write y^T
                        + (n_h * D + n_o * n_h) * s_it   # weights
                        + (n_h + n_o) * 4),              # biases
    )

    out_t = pl.pallas_call(
        stonet_kernel,
        out_shape=jax.ShapeDtypeStruct((n_o, B), storage),
        grid=grid,
        in_specs=[
            pl.BlockSpec((D, tb), lambda i: (0, i)),       # x^T: batch-tiled on lanes
            pl.BlockSpec((n_h, D), lambda i: (0, 0)),      # W2: resident
            pl.BlockSpec((n_h, 1), lambda i: (0, 0)),      # b2: resident
            pl.BlockSpec((n_o, n_h), lambda i: (0, 0)),    # W3: resident
            pl.BlockSpec((n_o, 1), lambda i: (0, 0)),      # b3: resident
        ],
        out_specs=pl.BlockSpec((n_o, tb), lambda i: (0, i)),
        compiler_params=pltpu.CompilerParams(
            dimension_semantics=("parallel",),             # megacore on v7x
            vmem_limit_bytes=vmem_limit),
        cost_estimate=cost,
    )(xt, w2s, b2c, w3s, b3c)

    return out_t.T                                          # (B, n_o)


def init_params(key, dim):
    # Deterministic init mirroring nn.Linear's U(-1/sqrt(fan_in), 1/sqrt(fan_in)),
    # weights in PyTorch (out_features, in_features) layout.
    k1, k2, k3, k4, k5, k6 = jax.random.split(key, 6)

    # fc1 (dim -> 50): defined in the module's __init__ but UNUSED in forward();
    # initialized only for parity with the PyTorch parameter set.
    bound1 = 1.0 / jnp.sqrt(float(dim))
    _w1 = jax.random.uniform(k1, (50, dim), jnp.float32, -bound1, bound1)
    _b1 = jax.random.uniform(k2, (50,), jnp.float32, -bound1, bound1)

    bound2 = 1.0 / jnp.sqrt(50.0)
    w2 = jax.random.uniform(k3, (30, 50), jnp.float32, -bound2, bound2)
    b2 = jax.random.uniform(k4, (30,), jnp.float32, -bound2, bound2)

    bound3 = 1.0 / jnp.sqrt(30.0)
    w3 = jax.random.uniform(k5, (10, 30), jnp.float32, -bound3, bound3)
    b3 = jax.random.uniform(k6, (10,), jnp.float32, -bound3, bound3)

    return w2, b2, w3, b3


if __name__ == "__main__":
    key = jax.random.PRNGKey(0)
    k_x, k_x2, k_p = jax.random.split(key, 3)

    DIM = 50  # forward() feeds x straight into fc2, so input feature dim == 50
    w2, b2, w3, b3 = init_params(k_p, DIM)

    def ref_fn(xv):
        return jnp.tanh(jnp.tanh(jnp.tanh(xv) @ w2.T + b2) @ w3.T + b3)

    # Small batch (single block), f32 path -> tight tolerance.
    x_small = jax.random.normal(k_x, (8, DIM), dtype=jnp.float32)
    out_f32 = jax.block_until_ready(
        stonet_forward(x_small, w2, b2, w3, b3, compute_dtype=jnp.float32))
    assert out_f32.shape == (8, 10)
    assert jnp.allclose(out_f32, ref_fn(x_small), atol=1e-5, rtol=1e-5)

    # Larger batch exercising a multi-step grid with a partial trailing block,
    # default bf16 storage -> loose tolerance.
    x_big = jax.random.normal(k_x2, (300, DIM), dtype=jnp.float32)
    out_bf16 = jax.block_until_ready(stonet_forward(x_big, w2, b2, w3, b3))
    assert out_bf16.shape == (300, 10)
    assert jnp.allclose(out_bf16.astype(jnp.float32), ref_fn(x_big), atol=3e-2)

    print("KERNEL_OK")
</pallas_src>

<mosaic_0001>
module attributes {stable_mosaic.version = 11 : i64} {
  func.func @stonet_kernel(%arg0: i32, %arg1: memref<50x8xf32, #tpu.memory_space<vmem>>, %arg2: memref<30x50xf32, #tpu.memory_space<vmem>>, %arg3: memref<30x1xf32, #tpu.memory_space<vmem>>, %arg4: memref<10x30xf32, #tpu.memory_space<vmem>>, %arg5: memref<10x1xf32, #tpu.memory_space<vmem>>, %arg6: memref<10x8xf32, #tpu.memory_space<vmem>>) attributes {dimension_semantics = [#tpu.dimension_semantics<parallel>], iteration_bounds = array<i64: 1>, scalar_prefetch = 0 : i64, scratch_operands = 0 : i64, tpu.core_type = #tpu.core_type<tc>, window_params = [{transform_indices = @transform_0, window_bounds = array<i64: 50, 8>}, {pipeline_mode = #tpu.pipeline_mode<synchronous>, transform_indices = @transform_1, window_bounds = array<i64: 30, 50>}, {pipeline_mode = #tpu.pipeline_mode<synchronous>, transform_indices = @transform_2, window_bounds = array<i64: 30, 1>}, {pipeline_mode = #tpu.pipeline_mode<synchronous>, transform_indices = @transform_3, window_bounds = array<i64: 10, 30>}, {pipeline_mode = #tpu.pipeline_mode<synchronous>, transform_indices = @transform_4, window_bounds = array<i64: 10, 1>}, {transform_indices = @transform_5, window_bounds = array<i64: 10, 8>}]} {
    %c0 = arith.constant 0 : index
    %c0_0 = arith.constant 0 : index
    %0 = vector.load %arg2[%c0, %c0_0] : memref<30x50xf32, #tpu.memory_space<vmem>>, vector<30x50xf32>
    %c0_1 = arith.constant 0 : index
    %c0_2 = arith.constant 0 : index
    %1 = vector.load %arg4[%c0_1, %c0_2] : memref<10x30xf32, #tpu.memory_space<vmem>>, vector<10x30xf32>
    %c0_3 = arith.constant 0 : index
    %c0_4 = arith.constant 0 : index
    %2 = vector.load %arg1[%c0_3, %c0_4] : memref<50x8xf32, #tpu.memory_space<vmem>>, vector<50x8xf32>
    %3 = math.tanh %2 : vector<50x8xf32>
    %cst = arith.constant dense<0.000000e+00> : vector<30x8xf32>
    %4 = tpu.matmul %0, %3, %cst {dimension_numbers = #tpu.dot_dimension_numbers<[1], [0], [0], [1], [0, 0, 1, 1], [], []>} : vector<30x50xf32>, vector<50x8xf32>, vector<30x8xf32> -> vector<30x8xf32>
    %c0_5 = arith.constant 0 : index
    %c0_6 = arith.constant 0 : index
    %5 = vector.load %arg3[%c0_5, %c0_6] : memref<30x1xf32, #tpu.memory_space<vmem>>, vector<30x1xf32>
    %6 = vector.broadcast %5 : vector<30x1xf32> to vector<30x8xf32>
    %7 = arith.addf %4, %6 : vector<30x8xf32>
    %8 = math.tanh %7 : vector<30x8xf32>
    %cst_7 = arith.constant dense<0.000000e+00> : vector<10x8xf32>
    %9 = tpu.matmul %1, %8, %cst_7 {dimension_numbers = #tpu.dot_dimension_numbers<[1], [0], [0], [1], [0, 0, 1, 1], [], []>} : vector<10x30xf32>, vector<30x8xf32>, vector<10x8xf32> -> vector<10x8xf32>
    %c0_8 = arith.constant 0 : index
    %c0_9 = arith.constant 0 : index
    %10 = vector.load %arg5[%c0_8, %c0_9] : memref<10x1xf32, #tpu.memory_space<vmem>>, vector<10x1xf32>
    %11 = vector.broadcast %10 : vector<10x1xf32> to vector<10x8xf32>
    %12 = arith.addf %9, %11 : vector<10x8xf32>
    %13 = math.tanh %12 : vector<10x8xf32>
    %c0_10 = arith.constant 0 : index
    %c0_11 = arith.constant 0 : index
    %14 = vector.load %arg6[%c0_10, %c0_11] : memref<10x8xf32, #tpu.memory_space<vmem>>, vector<10x8xf32>
    tpu.vector_store %arg6[%c0_10, %c0_11], %13 {strides = array<i32>} : memref<10x8xf32, #tpu.memory_space<vmem>>, vector<10x8xf32>,
    return
  }
  func.func @transform_0(%arg0: i32) -> (i32, i32) {
    %c0_i32 = arith.constant 0 : i32
    %c0_i32_0 = arith.constant 0 : i32
    return %c0_i32, %arg0 : i32, i32
  }
  func.func @transform_1(%arg0: i32) -> (i32, i32) {
    %c0_i32 = arith.constant 0 : i32
    %c0_i32_0 = arith.constant 0 : i32
    %c0_i32_1 = arith.constant 0 : i32
    return %c0_i32, %c0_i32_0 : i32, i32
  }
  func.func @transform_2(%arg0: i32) -> (i32, i32) {
    %c0_i32 = arith.constant 0 : i32
    %c0_i32_0 = arith.constant 0 : i32
    %c0_i32_1 = arith.constant 0 : i32
    return %c0_i32, %c0_i32_0 : i32, i32
  }
  func.func @transform_3(%arg0: i32) -> (i32, i32) {
    %c0_i32 = arith.constant 0 : i32
    %c0_i32_0 = arith.constant 0 : i32
    %c0_i32_1 = arith.constant 0 : i32
    return %c0_i32, %c0_i32_0 : i32, i32
  }
  func.func @transform_4(%arg0: i32) -> (i32, i32) {
    %c0_i32 = arith.constant 0 : i32
    %c0_i32_0 = arith.constant 0 : i32
    %c0_i32_1 = arith.constant 0 : i32
    return %c0_i32, %c0_i32_0 : i32, i32
  }
  func.func @transform_5(%arg0: i32) -> (i32, i32) {
    %c0_i32 = arith.constant 0 : i32
    %c0_i32_0 = arith.constant 0 : i32
    return %c0_i32, %arg0 : i32, i32
  }
}

</mosaic_0001>

<llo_original>
// kernel: tpu_custom_call.1
$region0: #{tpu_custom_call.1}
  #allocation0 [shape = 'u32[]', space=smem, size = 0x4, offset = 0x4, fixed_abs, tag = 'smem constant byte address 0x4 - core index']
  #allocation1 [shape = 'u32[144,128]{1,0:T(1,128)}', space=vmem, size = 0x12000, scoped, tag = 'internal scratch']
  %s0 = inlined_call_operand.vmem [shape: f32[50,8], index: 0, kind: input, shape index: {}]
  %s1 = inlined_call_operand.vmem [shape: f32[30,50], index: 1, kind: input, shape index: {}]
  %s2 = inlined_call_operand.vmem [shape: f32[30,1], index: 2, kind: input, shape index: {}]
  %s3 = inlined_call_operand.vmem [shape: f32[10,30], index: 3, kind: input, shape index: {}]
  %s4 = inlined_call_operand.vmem [shape: f32[10,1], index: 4, kind: input, shape index: {}]
  %s5 = inlined_call_operand.vmem [shape: f32[10,8], index: 5, kind: output, shape index: {}]
  %s6 = sld [smem:[#allocation0]]
  $region30: #{tpu_custom_call.1} parent=0
    _
  %s8 = ssub.s32 1, %s6
  %s9 = scalar_select 0, %s8, %s6
  // Predicated region
  $region2: #{tpu_custom_call.1} parent=0 // pred_check
    _
  $region3: #{tpu_custom_call.1} parent=0 // pred_check_branch
    %11 = sbr.rel (0) target = $region5
  $region4: #{tpu_custom_call.1} parent=0 // pred_region
    _
  $region5: #{tpu_custom_call.1} parent=0 // pred_fallthru
    _
  // Predicated region
  $region6: #{tpu_custom_call.1} parent=0 // pred_check
    _
  $region7: #{tpu_custom_call.1} parent=0 // pred_check_branch
    %13 = sbr.rel (0) target = $region9
  $region8: #{tpu_custom_call.1} parent=0 // pred_region
    _
  $region9: #{tpu_custom_call.1} parent=0 // pred_fallthru
    _
  // Predicated region
  $region10: #{tpu_custom_call.1} parent=0 // pred_check
    _
  $region11: #{tpu_custom_call.1} parent=0 // pred_check_branch
    %15 = sbr.rel (0) target = $region13
  $region12: #{tpu_custom_call.1} parent=0 // pred_region
    _
  $region13: #{tpu_custom_call.1} parent=0 // pred_fallthru
    _
  // Predicated region
  $region14: #{tpu_custom_call.1} parent=0 // pred_check
    _
  $region15: #{tpu_custom_call.1} parent=0 // pred_check_branch
    %17 = sbr.rel (0) target = $region17
  $region16: #{tpu_custom_call.1} parent=0 // pred_region
    _
  $region17: #{tpu_custom_call.1} parent=0 // pred_fallthru
    _
  // Predicated region
  $region18: #{tpu_custom_call.1} parent=0 // pred_check
    _
  $region19: #{tpu_custom_call.1} parent=0 // pred_check_branch
    %19 = sbr.rel (0) target = $region21
  $region20: #{tpu_custom_call.1} parent=0 // pred_region
    _
  $region21: #{tpu_custom_call.1} parent=0 // pred_fallthru
    _
  %v20 = vld [vmem:[%s1] sm:$0xff]
  %v21 = vld [vmem:[%s1 + $0x8] sm:$0xff]
  %v22 = vld [vmem:[%s1 + $0x10] sm:$0xff]
  %v23 = vld [vmem:[%s1 + $0x18] sm:$0x3f]
  %v24 = vld [vmem:[%s3] sm:$0xff]
  %v25 = vld [vmem:[%s3 + $0x8] sm:$0x3]
  %v26 = vld [vmem:[%s0] sm:$0xff]
  %v27 = vld [vmem:[%s0 + $0x8] sm:$0xff]
  %v28 = vld [vmem:[%s0 + $0x10] sm:$0xff]
  %v29 = vld [vmem:[%s0 + $0x18] sm:$0xff]
  %v30 = vld [vmem:[%s0 + $0x20] sm:$0xff]
  %v31 = vld [vmem:[%s0 + $0x28] sm:$0xff]
  %v32 = vld [vmem:[%s0 + $0x30] sm:$0x3]
  %v33 = vtanh.pop %v26
  %v34 = vtanh.pop %v27
  %v35 = vtanh.pop %v28
  %v36 = vtanh.pop %v29
  %v37 = vtanh.pop %v30
  %v38 = vtanh.pop %v31
  %v39 = vtanh.pop %v32
  %v40 = vld [vmem:[%s2] sm:$0xff]
  %v41 = vld [vmem:[%s2 + $0x8] sm:$0xff]
  %v42 = vld [vmem:[%s2 + $0x10] sm:$0xff]
  %v43 = vld [vmem:[%s2 + $0x18] sm:$0x3f]
  %45 = vset.pattern.permute.xlu0 0
  %46 = vperm.xlu0 %45, %v40
  %v47 = vpop.permute.xlu0 %46
  %50 = vset.pattern.permute.xlu0 0
  %51 = vperm.xlu0 %50, %v41
  %v52 = vpop.permute.xlu0 %51
  %55 = vset.pattern.permute.xlu0 0
  %56 = vperm.xlu0 %55, %v42
  %v57 = vpop.permute.xlu0 %56
  %60 = vset.pattern.permute.xlu0 0
  %61 = vperm.xlu0 %60, %v43
  %v62 = vpop.permute.xlu0 %61
  %vm64 = vcmask 408576
  %v66 = vsel %vm64, %v20, 0
  %v69 = vsel %vm64, %v21, 0
  %v72 = vsel %vm64, %v22, 0
  %v75 = vsel %vm64, %v23, 0
  %vm77 = vcmask 1041408
  %v79 = vsel %vm77, %v39, 0
  %81 = vmatprep.subr.mxu0 0.0
  %82 = vmatpush1.msra.mxu0 0.0
  %83 = vmatprep.subr.mxu0 0.0
  %84 = vmatpush1.msra.mxu0 0.0
  %85 = vmatprep.subr.mxu0 0.0
  %86 = vmatpush1.msra.mxu0 0.0
  %87 = vmatprep.subr.mxu0 0.0
  %88 = vmatpush1.msra.mxu0 0.0
  %89 = vmatprep.subr.mxu0 0.0
  %90 = vmatpush1.msra.mxu0 0.0
  %91 = vmatprep.subr.mxu0 0.0
  %92 = vmatpush1.msra.mxu0 0.0
  %93 = vmatprep.subr.mxu0 0.0
  %94 = vmatpush1.msra.mxu0 0.0
  %95 = vmatprep.subr.mxu0 0.0
  %96 = vmatpush1.msra.mxu0 0.0
  %97 = vmatprep.subr.mxu0 0.0
  %98 = vmatpush1.msra.mxu0 0.0
  %99 = vmatprep.subr.mxu0 0.0
  %100 = vmatpush1.msra.mxu0 %v79
  %101 = vmatprep.subr.mxu0 0.0
  %102 = vmatpush1.msra.mxu0 %v38
  %103 = vmatprep.subr.mxu0 0.0
  %104 = vmatpush1.msra.mxu0 %v37
  %105 = vmatprep.subr.mxu0 0.0
  %106 = vmatpush1.msra.mxu0 %v36
  %107 = vmatprep.subr.mxu0 0.0
  %108 = vmatpush1.msra.mxu0 %v35
  %109 = vmatprep.subr.mxu0 0.0
  %110 = vmatpush1.msra.mxu0 %v34
  %111 = vmatprep.subr.mxu0 0.0
  %112 = vmatpush1.msra.mxu0 %v33
  %113 = vmatprep.subr.mxu0 0.0
  %114 = vmatpush2.msra.mxu0 0.0
  %115 = vmatprep.subr.mxu0 0.0
  %116 = vmatpush2.msra.mxu0 0.0
  %117 = vmatprep.subr.mxu0 0.0
  %118 = vmatpush2.msra.mxu0 0.0
  %119 = vmatprep.subr.mxu0 0.0
  %120 = vmatpush2.msra.mxu0 0.0
  %121 = vmatprep.subr.mxu0 0.0
  %122 = vmatpush2.msra.mxu0 0.0
  %123 = vmatprep.subr.mxu0 0.0
  %124 = vmatpush2.msra.mxu0 0.0
  %125 = vmatprep.subr.mxu0 0.0
  %126 = vmatpush2.msra.mxu0 0.0
  %127 = vmatprep.subr.mxu0 0.0
  %128 = vmatpush2.msra.mxu0 0.0
  %129 = vmatprep.subr.mxu0 0.0
  %130 = vmatpush2.msra.mxu0 0.0
  %131 = vmatprep.subr.mxu0 0.0
  %132 = vmatpush2.msra.mxu0 0.0
  %133 = vmatprep.subr.mxu0 0.0
  %134 = vmatpush2.msra.mxu0 0.0
  %135 = vmatprep.subr.mxu0 0.0
  %136 = vmatpush2.msra.mxu0 0.0
  %137 = vmatprep.subr.mxu0 0.0
  %138 = vmatpush2.msra.mxu0 0.0
  %139 = vmatprep.subr.mxu0 0.0
  %140 = vmatpush2.msra.mxu0 0.0
  %141 = vmatprep.subr.mxu0 0.0
  %142 = vmatpush2.msra.mxu0 0.0
  %143 = vmatprep.subr.mxu0 0.0
  %144 = vmatpush2.msra.mxu0 0.0
  %145 = vmatprep.mubr.f32.mxu0 0.0
  %146 = vmatmul.mubr.f32.gmra.mxu0 %v66
  %v147 = vpop.f32.mrf.mxu0
  %v148 = vadd.f32 %v47, %v147
  %v149 = vpop.f32.mrf.mxu0
  %150 = vmatprep.mubr.f32.mxu0 0.0
  %151 = vmatmul.mubr.f32.gmra.mxu0 %v69
  %v152 = vpop.f32.mrf.mxu0
  %v153 = vadd.f32 %v52, %v152
  %v154 = vpop.f32.mrf.mxu0
  %155 = vmatprep.mubr.f32.mxu0 0.0
  %156 = vmatmul.mubr.f32.gmra.mxu0 %v72
  %v157 = vpop.f32.mrf.mxu0
  %v158 = vadd.f32 %v57, %v157
  %v159 = vpop.f32.mrf.mxu0
  %160 = vmatprep.mubr.f32.mxu0 0.0
  %161 = vmatmul.mubr.f32.gmra.mxu0 %v75
  %v162 = vpop.f32.mrf.mxu0
  %v163 = vadd.f32 %v62, %v162
  %v164 = vpop.f32.mrf.mxu0
  %165 = vdwg.mxu0
  %v166 = vtanh.pop %v148
  %v167 = vtanh.pop %v153
  %v168 = vtanh.pop %v158
  %v169 = vtanh.pop %v163
  %v170 = vld [vmem:[%s4] sm:$0xff]
  %v171 = vld [vmem:[%s4 + $0x8] sm:$0x3]
  %173 = vset.pattern.permute.xlu0 0
  %174 = vperm.xlu0 %173, %v170
  %v175 = vpop.permute.xlu0 %174
  %178 = vset.pattern.permute.xlu0 0
  %179 = vperm.xlu0 %178, %v171
  %v180 = vpop.permute.xlu0 %179
  %vm182 = vcmask 244736
  %v184 = vsel %vm182, %v24, 0
  %v187 = vsel %vm182, %v25, 0
  %vm189 = vcmask 1045504
  %v191 = vsel %vm189, %v169, 0
  %193 = vmatprep.subr.mxu0 0.0
  %194 = vmatpush1.msra.mxu0 0.0
  %195 = vmatprep.subr.mxu0 0.0
  %196 = vmatpush1.msra.mxu0 0.0
  %197 = vmatprep.subr.mxu0 0.0
  %198 = vmatpush1.msra.mxu0 0.0
  %199 = vmatprep.subr.mxu0 0.0
  %200 = vmatpush1.msra.mxu0 0.0
  %201 = vmatprep.subr.mxu0 0.0
  %202 = vmatpush1.msra.mxu0 0.0
  %203 = vmatprep.subr.mxu0 0.0
  %204 = vmatpush1.msra.mxu0 0.0
  %205 = vmatprep.subr.mxu0 0.0
  %206 = vmatpush1.msra.mxu0 0.0
  %207 = vmatprep.subr.mxu0 0.0
  %208 = vmatpush1.msra.mxu0 0.0
  %209 = vmatprep.subr.mxu0 0.0
  %210 = vmatpush1.msra.mxu0 0.0
  %211 = vmatprep.subr.mxu0 0.0
  %212 = vmatpush1.msra.mxu0 0.0
  %213 = vmatprep.subr.mxu0 0.0
  %214 = vmatpush1.msra.mxu0 0.0
  %215 = vmatprep.subr.mxu0 0.0
  %216 = vmatpush1.msra.mxu0 0.0
  %217 = vmatprep.subr.mxu0 0.0
  %218 = vmatpush1.msra.mxu0 %v191
  %219 = vmatprep.subr.mxu0 0.0
  %220 = vmatpush1.msra.mxu0 %v168
  %221 = vmatprep.subr.mxu0 0.0
  %222 = vmatpush1.msra.mxu0 %v167
  %223 = vmatprep.subr.mxu0 0.0
  %224 = vmatpush1.msra.mxu0 %v166
  %225 = vmatprep.subr.mxu0 0.0
  %226 = vmatpush2.msra.mxu0 0.0
  %227 = vmatprep.subr.mxu0 0.0
  %228 = vmatpush2.msra.mxu0 0.0
  %229 = vmatprep.subr.mxu0 0.0
  %230 = vmatpush2.msra.mxu0 0.0
  %231 = vmatprep.subr.mxu0 0.0
  %232 = vmatpush2.msra.mxu0 0.0
  %233 = vmatprep.subr.mxu0 0.0
  %234 = vmatpush2.msra.mxu0 0.0
  %235 = vmatprep.subr.mxu0 0.0
  %236 = vmatpush2.msra.mxu0 0.0
  %237 = vmatprep.subr.mxu0 0.0
  %238 = vmatpush2.msra.mxu0 0.0
  %239 = vmatprep.subr.mxu0 0.0
  %240 = vmatpush2.msra.mxu0 0.0
  %241 = vmatprep.subr.mxu0 0.0
  %242 = vmatpush2.msra.mxu0 0.0
  %243 = vmatprep.subr.mxu0 0.0
  %244 = vmatpush2.msra.mxu0 0.0
  %245 = vmatprep.subr.mxu0 0.0
  %246 = vmatpush2.msra.mxu0 0.0
  %247 = vmatprep.subr.mxu0 0.0
  %248 = vmatpush2.msra.mxu0 0.0
  %249 = vmatprep.subr.mxu0 0.0
  %250 = vmatpush2.msra.mxu0 0.0
  %251 = vmatprep.subr.mxu0 0.0
  %252 = vmatpush2.msra.mxu0 0.0
  %253 = vmatprep.subr.mxu0 0.0
  %254 = vmatpush2.msra.mxu0 0.0
  %255 = vmatprep.subr.mxu0 0.0
  %256 = vmatpush2.msra.mxu0 0.0
  %257 = vmatprep.mubr.f32.mxu0 0.0
  %258 = vmatmul.mubr.f32.gmra.mxu0 %v184
  %v259 = vpop.f32.mrf.mxu0
  %v260 = vadd.f32 %v175, %v259
  %v261 = vpop.f32.mrf.mxu0
  %262 = vmatprep.mubr.f32.mxu0 0.0
  %263 = vmatmul.mubr.f32.gmra.mxu0 %v187
  %v264 = vpop.f32.mrf.mxu0
  %v265 = vadd.f32 %v180, %v264
  %v266 = vpop.f32.mrf.mxu0
  %267 = vdwg.mxu0
  %v268 = vtanh.pop %v260
  %v269 = vtanh.pop %v265
  %vm270 = vcmask 64512
  %271 = vst.msk [vmem:[%s5] sm:$0xff] %vm270, %v268
  %vm272 = vcmask 58368
  %273 = vst.msk [vmem:[%s5 + $0x8] sm:$0x3] %vm272, %v269
  // Predicated region
  $region22: #{tpu_custom_call.1} parent=0 // pred_check
    _
  $region23: #{tpu_custom_call.1} parent=0 // pred_check_branch
    %275 = sbr.rel (0) target = $region25
  $region24: #{tpu_custom_call.1} parent=0 // pred_region
    _
  $region25: #{tpu_custom_call.1} parent=0 // pred_fallthru
    _
  // Predicated region
  $region26: #{tpu_custom_call.1} parent=0 // pred_check
    _
  $region27: #{tpu_custom_call.1} parent=0 // pred_check_branch
    %277 = sbr.rel (0) target = $region29
  $region28: #{tpu_custom_call.1} parent=0 // pred_region
    _
  $region29: #{tpu_custom_call.1} parent=0 // pred_fallthru
    _

</llo_original>
